<compile_context>
chip_gen: v7x
topology: tpu7x:2x2x1
jax: 0.10.0
libtpu: 0.0.40
codegen_flags: <defaults>
</compile_context>

<pallas_src>
import functools

import jax
import jax.numpy as jnp
from jax.experimental import pallas as pl
from jax.experimental.pallas import tpu as pltpu

DEGREE = 3                      # matches the PyTorch module's `degree`
_LOG2E = 1.4426950408889634     # log2(e), folded into the std coefficients

_TARGET_BLOCK_BYTES = 2 * 1024 * 1024   # ~2 MiB per block
_MIN_GRID_STEPS = 4                     # keep both v7x TensorCores fed


def _poly_kernel(cmean_ref, cstd_ref, x_ref, mean_ref, std_ref, *, degree):
    # cmean_ref, cstd_ref : SMEM scalar-prefetch refs, shape (degree+1,), f32
    # x_ref, mean_ref, std_ref : VMEM tiles, shape (tile_rows, lanes), f32
    x = x_ref[...]
    # Horner form, statically unrolled at trace time (degree >= 1).
    acc_mean = cmean_ref[degree] * x + cmean_ref[degree - 1]
    acc_std = cstd_ref[degree] * x + cstd_ref[degree - 1]
    for i in range(degree - 2, -1, -1):
        acc_mean = acc_mean * x + cmean_ref[i]
        acc_std = acc_std * x + cstd_ref[i]
    mean_ref[...] = acc_mean
    # log2(e) is already folded into cstd -> native EUP exp2.
    std_ref[...] = jnp.exp2(acc_std)


def _pick_tile_rows(rows, lanes):
    """Sublane rows per grid step: ~2 MiB blocks, >= _MIN_GRID_STEPS steps."""
    max_rows = max(_TARGET_BLOCK_BYTES // (4 * lanes), 8)
    if rows <= 8:
        return rows                       # single small block, full extent
    per_step = pl.cdiv(rows, _MIN_GRID_STEPS)
    per_step = ((per_step + 7) // 8) * 8  # 8-sublane alignment
    return min(max_rows, per_step)


def polynomial_regressor(x, coeff_mean, coeff_std):
    """mean = P_mean(x), std = exp(P_std(x)); both shaped like x."""
    degree = int(coeff_mean.shape[0]) - 1
    assert degree >= 1, "kernel assumes a polynomial of degree >= 1"
    orig_shape = x.shape
    flat = x.reshape(-1).astype(jnp.float32)
    n = flat.shape[0]

    cmean = coeff_mean.astype(jnp.float32)
    # Fold exp(y) == exp2(y * log2 e) into the std coefficients: 4 scalar
    # multiplies in the wrapper, saves one VPU multiply per element in-kernel.
    cstd = coeff_std.astype(jnp.float32) * jnp.float32(_LOG2E)

    # Largest lane width (multiple of 128, <= 1024) dividing N: lane-dense,
    # unmasked loads/stores, and zero pad/slice overhead on the common path.
    lanes = next((w for w in (1024, 512, 256, 128) if n % w == 0), None)
    ragged = lanes is None
    if ragged:
        # Rare ragged case (N not a multiple of 128): pad by <128 elements and
        # slice outputs back.  Costs one small extra copy; all 128-aligned
        # sizes take the zero-copy path above.
        lanes = 128
        flat = jnp.pad(flat, (0, (-n) % lanes))
    rows = flat.shape[0] // lanes
    x2d = flat.reshape(rows, lanes)

    tile_rows = _pick_tile_rows(rows, lanes)
    grid = (pl.cdiv(rows, tile_rows),)
    tile_spec = pl.BlockSpec((tile_rows, lanes), lambda i, cm, cs: (i, 0))

    cost = pl.CostEstimate(
        flops=4 * degree * n,        # two Horner chains (mul+add per degree)
        transcendentals=n,           # one exp2 per element
        bytes_accessed=12 * n,       # 4 B read + 2 * 4 B written per element
    )

    mean2d, std2d = pl.pallas_call(
        functools.partial(_poly_kernel, degree=degree),
        out_shape=(
            jax.ShapeDtypeStruct((rows, lanes), jnp.float32),
            jax.ShapeDtypeStruct((rows, lanes), jnp.float32),
        ),
        grid_spec=pltpu.PrefetchScalarGridSpec(
            num_scalar_prefetch=2,
            grid=grid,
            in_specs=[tile_spec],
            out_specs=(tile_spec, tile_spec),
        ),
        compiler_params=pltpu.CompilerParams(
            dimension_semantics=("parallel",),
        ),
        cost_estimate=cost,
    )(cmean, cstd, x2d)

    if ragged:
        mean = mean2d.reshape(-1)[:n].reshape(orig_shape)
        std = std2d.reshape(-1)[:n].reshape(orig_shape)
    else:
        mean = mean2d.reshape(orig_shape)
        std = std2d.reshape(orig_shape)
    return mean, std


if __name__ == "__main__":
    key = jax.random.PRNGKey(0)
    k_cm, k_cs, k_x, k_x2 = jax.random.split(key, 4)

    # Deterministic "parameters" (same shapes as nn.Parameter(torch.randn(degree+1)))
    coeff_mean = jax.random.normal(k_cm, (DEGREE + 1,), dtype=jnp.float32)
    coeff_std = jax.random.normal(k_cs, (DEGREE + 1,), dtype=jnp.float32)

    # Lane-aligned input (B, C, H, W) = (2, 4, 16, 16); scaled so exp() of the
    # degree-3 polynomial stays comfortably finite.
    x = 0.5 * jax.random.normal(k_x, (2, 4, 16, 16), dtype=jnp.float32)
    mean, std = polynomial_regressor(x, coeff_mean, coeff_std)
    jax.block_until_ready((mean, std))

    # Reference in plain JAX (power-sum form, matching PyTorch semantics).
    ref_mean = sum(coeff_mean[i] * x ** i for i in range(DEGREE + 1))
    ref_std = jnp.exp(sum(coeff_std[i] * x ** i for i in range(DEGREE + 1)))
    assert jnp.allclose(mean, ref_mean, atol=1e-5, rtol=1e-5)
    assert jnp.allclose(std, ref_std, atol=1e-4, rtol=1e-4)

    # Ragged (non-128-multiple) input exercises the fallback path.
    x2 = 0.5 * jax.random.normal(k_x2, (3, 5, 7), dtype=jnp.float32)
    mean2, std2 = polynomial_regressor(x2, coeff_mean, coeff_std)
    jax.block_until_ready((mean2, std2))
    ref_mean2 = sum(coeff_mean[i] * x2 ** i for i in range(DEGREE + 1))
    ref_std2 = jnp.exp(sum(coeff_std[i] * x2 ** i for i in range(DEGREE + 1)))
    assert jnp.allclose(mean2, ref_mean2, atol=1e-5, rtol=1e-5)
    assert jnp.allclose(std2, ref_std2, atol=1e-4, rtol=1e-4)

    print("KERNEL_OK")
</pallas_src>

<mosaic_0001>
module attributes {stable_mosaic.version = 11 : i64} {
  func.func @_poly_kernel(%arg0: i32, %arg1: memref<4xf32, #tpu.memory_space<smem>>, %arg2: memref<4xf32, #tpu.memory_space<smem>>, %arg3: memref<2x1024xf32, #tpu.memory_space<vmem>>, %arg4: memref<2x1024xf32, #tpu.memory_space<vmem>>, %arg5: memref<2x1024xf32, #tpu.memory_space<vmem>>) attributes {dimension_semantics = [#tpu.dimension_semantics<parallel>], iteration_bounds = array<i64: 1>, scalar_prefetch = 2 : i64, scratch_operands = 0 : i64, tpu.core_type = #tpu.core_type<tc>, window_params = [{transform_indices = @transform_0, window_bounds = array<i64: 2, 1024>}, {transform_indices = @transform_1, window_bounds = array<i64: 2, 1024>}, {transform_indices = @transform_2, window_bounds = array<i64: 2, 1024>}]} {
    %c0 = arith.constant 0 : index
    %c0_0 = arith.constant 0 : index
    %0 = vector.load %arg3[%c0, %c0_0] : memref<2x1024xf32, #tpu.memory_space<vmem>>, vector<2x1024xf32>
    %c3 = arith.constant 3 : index
    %1 = memref.load %arg1[%c3] : memref<4xf32, #tpu.memory_space<smem>>
    %2 = vector.broadcast %1 : f32 to vector<2x1024xf32>
    %3 = arith.mulf %2, %0 : vector<2x1024xf32>
    %c2 = arith.constant 2 : index
    %4 = memref.load %arg1[%c2] : memref<4xf32, #tpu.memory_space<smem>>
    %5 = vector.broadcast %4 : f32 to vector<2x1024xf32>
    %6 = arith.addf %3, %5 : vector<2x1024xf32>
    %c3_1 = arith.constant 3 : index
    %7 = memref.load %arg2[%c3_1] : memref<4xf32, #tpu.memory_space<smem>>
    %8 = vector.broadcast %7 : f32 to vector<2x1024xf32>
    %9 = arith.mulf %8, %0 : vector<2x1024xf32>
    %c2_2 = arith.constant 2 : index
    %10 = memref.load %arg2[%c2_2] : memref<4xf32, #tpu.memory_space<smem>>
    %11 = vector.broadcast %10 : f32 to vector<2x1024xf32>
    %12 = arith.addf %9, %11 : vector<2x1024xf32>
    %13 = arith.mulf %6, %0 : vector<2x1024xf32>
    %c1 = arith.constant 1 : index
    %14 = memref.load %arg1[%c1] : memref<4xf32, #tpu.memory_space<smem>>
    %15 = vector.broadcast %14 : f32 to vector<2x1024xf32>
    %16 = arith.addf %13, %15 : vector<2x1024xf32>
    %17 = arith.mulf %12, %0 : vector<2x1024xf32>
    %c1_3 = arith.constant 1 : index
    %18 = memref.load %arg2[%c1_3] : memref<4xf32, #tpu.memory_space<smem>>
    %19 = vector.broadcast %18 : f32 to vector<2x1024xf32>
    %20 = arith.addf %17, %19 : vector<2x1024xf32>
    %21 = arith.mulf %16, %0 : vector<2x1024xf32>
    %c0_4 = arith.constant 0 : index
    %22 = memref.load %arg1[%c0_4] : memref<4xf32, #tpu.memory_space<smem>>
    %23 = vector.broadcast %22 : f32 to vector<2x1024xf32>
    %24 = arith.addf %21, %23 : vector<2x1024xf32>
    %25 = arith.mulf %20, %0 : vector<2x1024xf32>
    %c0_5 = arith.constant 0 : index
    %26 = memref.load %arg2[%c0_5] : memref<4xf32, #tpu.memory_space<smem>>
    %27 = vector.broadcast %26 : f32 to vector<2x1024xf32>
    %28 = arith.addf %25, %27 : vector<2x1024xf32>
    %c0_6 = arith.constant 0 : index
    %c0_7 = arith.constant 0 : index
    %29 = vector.load %arg4[%c0_6, %c0_7] : memref<2x1024xf32, #tpu.memory_space<vmem>>, vector<2x1024xf32>
    tpu.vector_store %arg4[%c0_6, %c0_7], %24 {strides = array<i32>} : memref<2x1024xf32, #tpu.memory_space<vmem>>, vector<2x1024xf32>,
    %30 = math.exp2 %28 : vector<2x1024xf32>
    %c0_8 = arith.constant 0 : index
    %c0_9 = arith.constant 0 : index
    %31 = vector.load %arg5[%c0_8, %c0_9] : memref<2x1024xf32, #tpu.memory_space<vmem>>, vector<2x1024xf32>
    tpu.vector_store %arg5[%c0_8, %c0_9], %30 {strides = array<i32>} : memref<2x1024xf32, #tpu.memory_space<vmem>>, vector<2x1024xf32>,
    return
  }
  func.func @transform_0(%arg0: i32, %arg1: memref<4xf32, #tpu.memory_space<smem>>, %arg2: memref<4xf32, #tpu.memory_space<smem>>) -> (i32, i32) {
    %c0_i32 = arith.constant 0 : i32
    %c0_i32_0 = arith.constant 0 : i32
    return %arg0, %c0_i32 : i32, i32
  }
  func.func @transform_1(%arg0: i32, %arg1: memref<4xf32, #tpu.memory_space<smem>>, %arg2: memref<4xf32, #tpu.memory_space<smem>>) -> (i32, i32) {
    %c0_i32 = arith.constant 0 : i32
    %c0_i32_0 = arith.constant 0 : i32
    return %arg0, %c0_i32 : i32, i32
  }
  func.func @transform_2(%arg0: i32, %arg1: memref<4xf32, #tpu.memory_space<smem>>, %arg2: memref<4xf32, #tpu.memory_space<smem>>) -> (i32, i32) {
    %c0_i32 = arith.constant 0 : i32
    %c0_i32_0 = arith.constant 0 : i32
    return %arg0, %c0_i32 : i32, i32
  }
}

</mosaic_0001>

<llo_original>
// kernel: tpu_custom_call.1
$region0: #{tpu_custom_call.1}
  #allocation0 [shape = 'u32[]', space=smem, size = 0x4, offset = 0x4, fixed_abs, tag = 'smem constant byte address 0x4 - core index']
  #allocation1 [shape = 'u32[144,128]{1,0:T(1,128)}', space=vmem, size = 0x12000, scoped, tag = 'internal scratch']
  #allocation2 [shape = 's32[1]{0}', space=sflag, size = 0x4, scoped, tag = 'scoped memory for tpu_custom_call.1']
  #allocation3 [shape = 'u8[512]{0}', space=smem, size = 0x200, scoped, tag = 'prefetched SMEM operand 0']
  #allocation4 [shape = 'u8[512]{0}', space=smem, size = 0x200, scoped, tag = 'prefetched SMEM operand 1']
  %s0 = inlined_call_operand.hbm [shape: f32[4], index: 0, kind: input, shape index: {}]
  %s1 = inlined_call_operand.vmem [shape: f32[4], index: 1, kind: input, shape index: {}]
  %s2 = inlined_call_operand.hbm [shape: f32[2,1024], index: 2, kind: input, shape index: {}]
  %s3 = inlined_call_operand.hbm [shape: f32[2,1024], index: 3, kind: output, shape index: {0}]
  %s4 = inlined_call_operand.hbm [shape: f32[2,1024], index: 4, kind: output, shape index: {1}]
  %5 = xla_tuple %s3, %s4
  %s6 = sld [smem:[#allocation0]]
  $region26: #{tpu_custom_call.1} parent=0
    _
  %s8 = ssub.s32 1, %s6
  %s9 = scalar_select 0, %s8, %s6
  %11 = dma.hbm_to_smem %s0, 16, [#allocation3], [#allocation2]
  %s12 = sshll.u32 %s1, 4
  %s13 = int_to_ptr.vmem [resolvable:$true] %s12
  %15 = dma.vmem_to_smem %s13, 16, [#allocation4], [#allocation2]
  %16 = dma.done [#allocation2], 32
  %17 = sfence
  $region1: #{tpu_custom_call.1} parent=0
    #allocation5 [shape = 'u8[8192]{0}', space=vmem, size = 0x2000, scoped, tag = 'input window, operand 2, single buffered']
    #allocation6 [shape = 's32[1]{0}', space=sflag, size = 0x4, scoped, tag = 'scoped memory for tpu_custom_call.1']
    #allocation7 [shape = 's32[1]{0}', space=sflag, size = 0x4, scoped, tag = 'scoped memory for tpu_custom_call.1']
    #allocation8 [shape = 'u8[8192]{0}', space=vmem, size = 0x2000, scoped, tag = 'output window, operand 0, single buffered']
    #allocation9 [shape = 'u8[8192]{0}', space=vmem, size = 0x2000, scoped, tag = 'output window, operand 1, single buffered']
    #allocation10 [shape = 's32[1]{0}', space=sflag, size = 0x4, scoped, tag = 'scoped memory for tpu_custom_call.1']
    %18 = vsyncpa [#allocation6], 0
    %19 = vsyncpa [#allocation7], 0
    %20 = vsyncpa [#allocation10], 0
    // Predicated region
    $region2: #{tpu_custom_call.1} parent=1 // pred_check
      _
    $region3: #{tpu_custom_call.1} parent=1 // pred_check_branch
      %22 = sbr.rel (0) target = $region5
    $region4: #{tpu_custom_call.1} parent=1 // pred_region
      %s24 = ssub.s32 256, 256
      %25 = vsyncadd [#allocation6], %s24
      %s27 = sshll.u32 [#allocation5], 4
      %s28 = int_to_ptr.vmem [resolvable:$true] %s27
      %30 = dma.hbm_to_vmem [thread:$0]  %s2, 256, %s28, [#allocation6]
    $region5: #{tpu_custom_call.1} parent=1 // pred_fallthru
      _
    // Predicated region
    $region6: #{tpu_custom_call.1} parent=1 // pred_check
      _
    $region7: #{tpu_custom_call.1} parent=1 // pred_check_branch
      %32 = sbr.rel (0) target = $region9
    $region8: #{tpu_custom_call.1} parent=1 // pred_region
      %33 = dma.done [#allocation6], 256
    $region9: #{tpu_custom_call.1} parent=1 // pred_fallthru
      _
    %v34 = vld [vmem:[#allocation5] sm:$0xff]
    %v35 = vld [vmem:[#allocation5 + $0x8] sm:$0xff]
    %s36 = sld [smem:[#allocation3 + $0x3]]
    %v37 = vstv %s36
    %v38 = vmul.f32 %v37, %v34
    %v39 = vmul.f32 %v37, %v35
    %s40 = sld [smem:[#allocation3 + $0x2]]
    %v41 = vstv %s40
    %v42 = vadd.f32 %v38, %v41
    %v43 = vadd.f32 %v39, %v41
    %s44 = sld [smem:[#allocation4 + $0x3]]
    %v45 = vstv %s44
    %v46 = vmul.f32 %v45, %v34
    %v47 = vmul.f32 %v45, %v35
    %s48 = sld [smem:[#allocation4 + $0x2]]
    %v49 = vstv %s48
    %v50 = vadd.f32 %v46, %v49
    %v51 = vadd.f32 %v47, %v49
    %v52 = vmul.f32 %v42, %v34
    %v53 = vmul.f32 %v43, %v35
    %s54 = sld [smem:[#allocation3 + $0x1]]
    %v55 = vstv %s54
    %v56 = vadd.f32 %v52, %v55
    %v57 = vadd.f32 %v53, %v55
    %v58 = vmul.f32 %v50, %v34
    %v59 = vmul.f32 %v51, %v35
    %s60 = sld [smem:[#allocation4 + $0x1]]
    %v61 = vstv %s60
    %v62 = vadd.f32 %v58, %v61
    %v63 = vadd.f32 %v59, %v61
    %v64 = vmul.f32 %v56, %v34
    %v65 = vmul.f32 %v57, %v35
    %s66 = sld [smem:[#allocation3]]
    %v67 = vstv %s66
    %v68 = vadd.f32 %v64, %v67
    %v69 = vadd.f32 %v65, %v67
    %v70 = vmul.f32 %v62, %v34
    %v71 = vmul.f32 %v63, %v35
    %s72 = sld [smem:[#allocation4]]
    %v73 = vstv %s72
    %v74 = vadd.f32 %v70, %v73
    %v75 = vadd.f32 %v71, %v73
    %76 = vst [vmem:[#allocation8] sm:$0xff] %v68
    %77 = vst [vmem:[#allocation8 + $0x8] sm:$0xff] %v69
    %v78 = vpow.pop %v74
    %v79 = vpow.pop %v75
    %80 = vst [vmem:[#allocation9] sm:$0xff] %v78
    %81 = vst [vmem:[#allocation9 + $0x8] sm:$0xff] %v79
    // Predicated region
    $region10: #{tpu_custom_call.1} parent=1 // pred_check
      _
    $region11: #{tpu_custom_call.1} parent=1 // pred_check_branch
      %83 = sbr.rel (0) target = $region13
    $region12: #{tpu_custom_call.1} parent=1 // pred_region
      %s85 = ssub.s32 256, 256
      %86 = vsyncadd [#allocation7], %s85
      %s88 = sshll.u32 [#allocation8], 4
      %s89 = int_to_ptr.vmem [resolvable:$true] %s88
      %91 = dma.vmem_to_hbm [thread:$0]  %s89, 256, %s3, [#allocation7]
    $region13: #{tpu_custom_call.1} parent=1 // pred_fallthru
      _
    // Predicated region
    $region14: #{tpu_custom_call.1} parent=1 // pred_check
      _
    $region15: #{tpu_custom_call.1} parent=1 // pred_check_branch
      %93 = sbr.rel (0) target = $region17
    $region16: #{tpu_custom_call.1} parent=1 // pred_region
      %s95 = ssub.s32 256, 256
      %96 = vsyncadd [#allocation10], %s95
      %s98 = sshll.u32 [#allocation9], 4
      %s99 = int_to_ptr.vmem [resolvable:$true] %s98
      %101 = dma.vmem_to_hbm [thread:$0]  %s99, 256, %s4, [#allocation10]
    $region17: #{tpu_custom_call.1} parent=1 // pred_fallthru
      _
    // Predicated region
    $region18: #{tpu_custom_call.1} parent=1 // pred_check
      _
    $region19: #{tpu_custom_call.1} parent=1 // pred_check_branch
      %103 = sbr.rel (0) target = $region21
    $region20: #{tpu_custom_call.1} parent=1 // pred_region
      %104 = dma.done [#allocation7], 256
    $region21: #{tpu_custom_call.1} parent=1 // pred_fallthru
      _
    // Predicated region
    $region22: #{tpu_custom_call.1} parent=1 // pred_check
      _
    $region23: #{tpu_custom_call.1} parent=1 // pred_check_branch
      %106 = sbr.rel (0) target = $region25
    $region24: #{tpu_custom_call.1} parent=1 // pred_region
      %107 = dma.done [#allocation10], 256
    $region25: #{tpu_custom_call.1} parent=1 // pred_fallthru
      _
    %108 = vsyncpa [#allocation6], 1
    %109 = vsyncpa [#allocation7], 1
    %110 = vsyncpa [#allocation10], 1

</llo_original>
